<compile_context>
chip_gen: v7x
topology: tpu7x:2x2x1
jax: 0.10.0
libtpu: 0.0.40
codegen_flags: <defaults>
</compile_context>

<pallas_src>
import functools

import jax
import jax.numpy as jnp
from jax import lax
from jax.experimental import pallas as pl
from jax.experimental.pallas import tpu as pltpu

_MIB = 1024 * 1024


def _timewarp_kernel(gx_ref, x_ref, o_ref, wmat_ref, *, mode, reuse_weights):
    # gx_ref  : (1, 1, To)    lane-dense normalized x coords for this out tile
    # x_ref   : (1, Dt, Ts)   D tile, full source length
    # o_ref   : (1, Dt, To)
    # wmat_ref: (Ts, To)      weight scratch (f32, or bf16 for bf16 inputs)
    Ts = x_ref.shape[2]

    def _build_weights():
        gx = gx_ref[0].astype(jnp.float32)                      # (1, To)
        # align_corners=True mapping:  pixel = (gx + 1) / 2 * (W - 1)
        pos = (gx + 1.0) * 0.5 * jnp.float32(Ts - 1)            # (1, To)
        # rows (sublanes) = source position s, cols (lanes) = output position.
        # NOTE: a "native" f32 iota still lowers to an int iota + convert, and
        # the convert only runs during the (amortized) weight build, so the
        # int32 iota is kept here for lowering safety.
        src = lax.broadcasted_iota(jnp.int32, wmat_ref.shape, 0).astype(
            jnp.float32)                                        # (Ts, To)
        if mode == "bilinear":
            # Tent function == bilinear weights with padding_mode='zeros':
            # out-of-range neighbours never intersect a valid source row.
            w = jnp.maximum(0.0, 1.0 - jnp.abs(src - pos))
        elif mode == "nearest":
            # Round-half-to-even matches torch's nearbyint; an out-of-range
            # rounded position matches no source row -> zero padding.
            w = (src == jnp.round(pos)).astype(jnp.float32)
        else:
            raise ValueError(f"unsupported mode: {mode}")
        # Weight *math* stays f32; only the stored weights are (maybe) bf16.
        wmat_ref[...] = w.astype(wmat_ref.dtype)

    if reuse_weights:
        # Grid order (N, T_out, D): wmat depends only on (n, j) and the D axis
        # is 'arbitrary' (sequential), so rebuild only at the first D tile.
        pl.when(pl.program_id(2) == 0)(_build_weights)
    else:
        # Grid order (N, D, T_out): the output tile changes every step.
        _build_weights()

    # out[d, t_out] = sum_s x[d, s] * wmat[s, t_out]   (standard MXU feed;
    # bf16 x bf16 -> f32 acc on the native path when the input is bf16).
    lhs = x_ref[0]
    if lhs.dtype != wmat_ref.dtype:
        lhs = lhs.astype(wmat_ref.dtype)
    out = lax.dot_general(
        lhs, wmat_ref[...],
        dimension_numbers=(((1,), (0,)), ((), ())),
        preferred_element_type=jnp.float32)
    o_ref[0] = out.astype(o_ref.dtype)


def _round_up(v, m):
    return -(-v // m) * m


def _padded_block_bytes(shape, itemsize):
    """VMEM bytes of one buffered block, including (sublane, lane) padding."""
    lane = _round_up(shape[-1], 128)
    sublane_mult = 8 * max(1, 4 // itemsize)          # 8 for f32, 16 for bf16
    sub = _round_up(shape[-2], sublane_mult) if len(shape) >= 2 else 1
    lead = 1
    for s in shape[:-2]:
        lead *= s
    return lead * sub * lane * itemsize


def _footprint_bytes(d_tile, t_tile, T, x_itemsize, w_itemsize):
    """Live VMEM: double-buffered blocks + wmat scratch + f32 build headroom."""
    gx = _padded_block_bytes((1, 1, t_tile), 4)
    xb = _padded_block_bytes((1, d_tile, T), x_itemsize)
    ob = _padded_block_bytes((1, d_tile, t_tile), x_itemsize)
    wm = _padded_block_bytes((T, t_tile), w_itemsize)
    wbuild = _padded_block_bytes((T, t_tile), 4)      # f32 build-spill headroom
    return 2 * (gx + xb + ob) + wm + wbuild


def _vmem_capacity_bytes():
    try:
        return int(pltpu.get_tpu_info().vmem_capacity_bytes)
    except Exception:                                  # not on TPU / emulation
        return 64 * _MIB                               # conservative (v7x/TC)


def _pick_tiles(N, D, T, x_itemsize, w_itemsize, vmem_cap):
    """Chip-aware D / T_out tile sizes (budget ~80% of physical VMEM)."""
    budget = int(vmem_cap * 0.80)

    t_tile = T if T <= 512 else 512                    # multiple of 128 or full
    # v7x has 2 TCs (megacore on older chips): with N == 1 make sure the
    # 'parallel' axes still expose >= 2 work items.
    if N == 1 and T >= 256:
        t_tile = min(t_tile, 128 * pl.cdiv(T, 256))

    def fits(dt, tt):
        return _footprint_bytes(dt, tt, T, x_itemsize, w_itemsize) <= budget

    # Keep the MXU M dimension healthy: never shrink d_tile below min(D, 256).
    d_floor = D if D <= 256 else 256
    d_tile = D
    while d_tile > d_floor and not fits(d_tile, t_tile):
        d_tile = max(d_floor, _round_up(d_tile // 2, 8))
    while t_tile > 128 and not fits(d_tile, t_tile):
        t_tile = max(128, _round_up(t_tile // 2, 128))
    # TODO(synk): for extreme T, add a 4th 'arbitrary' grid axis tiling the
    # source length (K) with an f32 VMEM accumulator instead of collapsing
    # d_tile below the MXU-friendly floor (last-resort fallback below).
    while d_tile > 8 and not fits(d_tile, t_tile):
        d_tile = max(8, _round_up(d_tile // 2, 8))
    return d_tile, t_tile


@functools.partial(jax.jit, static_argnames=("mode",))
def time_warp(x, grid, mode="bilinear"):
    """x: (N, D, T), grid: (N, T, 2) -> (N, D, T); torch.grid_sample semantics
    (mode in {'bilinear','nearest'}, align_corners=True, padding_mode='zeros',
    input viewed as NCHW with H == 1)."""
    N, D, T = x.shape
    assert grid.shape == (N, T, 2)
    assert T <= (1 << 24)          # source indices must be exact in f32
    if mode not in ("bilinear", "nearest"):
        raise ValueError(f"unsupported mode: {mode}")

    # Lane-dense x coordinates only; the y coordinate is irrelevant for H == 1
    # and a (T, 2)-shaped block would waste 126/128 lanes of every DMA.
    gx = grid[:, :, 0].reshape(N, 1, T).astype(jnp.float32)

    # bf16 x -> bf16 weights & bf16 MXU operands (f32 accumulation); otherwise
    # keep exact f32 weights.  (Weight math is always f32 inside the kernel.)
    w_dtype = jnp.bfloat16 if x.dtype == jnp.bfloat16 else jnp.float32
    x_itemsize = x.dtype.itemsize
    w_itemsize = jnp.dtype(w_dtype).itemsize

    vmem_cap = _vmem_capacity_bytes()
    d_tile, t_tile = _pick_tiles(N, D, T, x_itemsize, w_itemsize, vmem_cap)
    n_d = pl.cdiv(D, d_tile)
    n_t = pl.cdiv(T, t_tile)

    if n_d == 1:
        # x block index is constant across the output-tile loop -> x is DMA'd
        # from HBM once per n; wmat rebuilt once per output tile.
        grid_dims = (N, n_t, 1)
        gx_map = lambda n, j, d: (n, 0, j)
        x_map = lambda n, j, d: (n, 0, 0)
        out_map = lambda n, j, d: (n, 0, j)
        reuse_weights = True
        semantics = ("parallel", "parallel", "arbitrary")
    else:
        # D must be tiled: pick the grid order by comparing HBM bytes saved by
        # keeping x resident vs. the extra VPU weight-build work (review #5).
        hbm_cycles = d_tile * T * x_itemsize / 1024.0    # ~1 KiB / cycle HBM
        build_cycles = 6.0 * T * t_tile / 4096.0         # ~6 VPU ops / element
        if hbm_cycles > build_cycles:
            # Memory-bound: x stays VMEM-resident across the inner output-tile
            # loop; wmat is rebuilt every step (no gate -> no staleness hazard).
            grid_dims = (N, n_d, n_t)
            gx_map = lambda n, d, j: (n, 0, j)
            x_map = lambda n, d, j: (n, d, 0)
            out_map = lambda n, d, j: (n, d, j)
            reuse_weights = False
            semantics = ("parallel", "arbitrary", "arbitrary")
        else:
            # Build-bound: wmat reused across D tiles; the D axis must stay
            # 'arbitrary' for the program_id(2)==0 rebuild gate.
            grid_dims = (N, n_t, n_d)
            gx_map = lambda n, j, d: (n, 0, j)
            x_map = lambda n, j, d: (n, d, 0)
            out_map = lambda n, j, d: (n, d, j)
            reuse_weights = True
            semantics = ("parallel", "parallel", "arbitrary")

    footprint = _footprint_bytes(d_tile, t_tile, T, x_itemsize, w_itemsize)
    vmem_limit = min(int(vmem_cap * 0.98),
                     max(int(footprint * 1.25) + 4 * _MIB, 32 * _MIB))

    kernel = functools.partial(_timewarp_kernel, mode=mode,
                               reuse_weights=reuse_weights)

    # TODO(synk): for long, monotone warp grids, scalar-prefetch per-output-tile
    # source offsets and contract only the <=2-tap band of wmat; the dense
    # contraction below is the correct fallback for arbitrary (non-smooth)
    # grids.
    return pl.pallas_call(
        kernel,
        out_shape=jax.ShapeDtypeStruct((N, D, T), x.dtype),
        grid_spec=pltpu.PrefetchScalarGridSpec(
            num_scalar_prefetch=0,
            grid=grid_dims,
            in_specs=[
                pl.BlockSpec((1, 1, t_tile), gx_map),
                pl.BlockSpec((1, d_tile, T), x_map),
            ],
            out_specs=pl.BlockSpec((1, d_tile, t_tile), out_map),
            scratch_shapes=[pltpu.VMEM((T, t_tile), w_dtype)],
        ),
        compiler_params=pltpu.CompilerParams(
            dimension_semantics=semantics,
            vmem_limit_bytes=vmem_limit),
    )(gx, x)


def _reference_time_warp(x, grid, mode="bilinear"):
    """Pure-JAX reference mirroring torch.grid_sample semantics (H=1)."""
    N, D, T = x.shape
    gx = grid[..., 0]                                  # (N, T)
    pos = (gx + 1.0) * 0.5 * (T - 1)

    def gather(idx, w):
        valid = (idx >= 0) & (idx < T)
        idx_c = jnp.clip(idx, 0, T - 1)
        vals = jnp.take_along_axis(
            x, jnp.broadcast_to(idx_c[:, None, :], x.shape), axis=2)
        return vals * (w * valid.astype(x.dtype))[:, None, :]

    if mode == "bilinear":
        x0 = jnp.floor(pos)
        w1 = pos - x0
        w0 = 1.0 - w1
        x0i = x0.astype(jnp.int32)
        return gather(x0i, w0) + gather(x0i + 1, w1)
    else:  # nearest
        idx = jnp.round(pos).astype(jnp.int32)
        return gather(idx, jnp.ones_like(pos))


if __name__ == "__main__":
    key = jax.random.PRNGKey(0)
    k_x, k_g = jax.random.split(key)

    N, D, T = 2, 16, 8
    x = jax.random.normal(k_x, (N, D, T), dtype=jnp.float32)
    # grid x-coords slightly beyond [-1, 1] to exercise zero-padding;
    # the y channel is ignored (H == 1, align_corners=True).
    grid = jax.random.uniform(k_g, (N, T, 2), dtype=jnp.float32,
                              minval=-1.1, maxval=1.1)

    # f32 path: exact f32 weights -> tight tolerance against the reference.
    out_bilinear = jax.block_until_ready(time_warp(x, grid, mode="bilinear"))
    out_nearest = jax.block_until_ready(time_warp(x, grid, mode="nearest"))
    ref_bilinear = _reference_time_warp(x, grid, mode="bilinear")
    ref_nearest = _reference_time_warp(x, grid, mode="nearest")

    assert out_bilinear.shape == (N, D, T)
    assert jnp.allclose(out_bilinear, ref_bilinear, atol=1e-5, rtol=1e-5)
    assert jnp.allclose(out_nearest, ref_nearest, atol=1e-5, rtol=1e-5)

    # bf16 path: native bf16 MXU contraction (f32 accumulation), loose check.
    x_bf16 = x.astype(jnp.bfloat16)
    out_bf16 = jax.block_until_ready(time_warp(x_bf16, grid, mode="bilinear"))
    ref_bf16 = _reference_time_warp(x_bf16.astype(jnp.float32), grid,
                                    mode="bilinear")
    assert out_bf16.dtype == jnp.bfloat16
    assert jnp.allclose(out_bf16.astype(jnp.float32), ref_bf16,
                        atol=6e-2, rtol=6e-2)

    print("KERNEL_OK")
</pallas_src>

<mosaic_0001>
module attributes {stable_mosaic.version = 11 : i64} {
  func.func @_timewarp_kernel(%arg0: i32, %arg1: i32, %arg2: i32, %arg3: memref<1x1x8xf32, #tpu.memory_space<vmem>>, %arg4: memref<1x16x8xf32, #tpu.memory_space<vmem>>, %arg5: memref<1x16x8xf32, #tpu.memory_space<vmem>>, %arg6: memref<8x8xf32, #tpu.memory_space<vmem>>) attributes {dimension_semantics = [#tpu.dimension_semantics<parallel>, #tpu.dimension_semantics<parallel>, #tpu.dimension_semantics<arbitrary>], iteration_bounds = array<i64: 2, 1, 1>, scalar_prefetch = 0 : i64, scratch_operands = 1 : i64, tpu.core_type = #tpu.core_type<tc>, window_params = [{transform_indices = @transform_0, window_bounds = array<i64: 1, 1, 8>}, {transform_indices = @transform_1, window_bounds = array<i64: 1, 16, 8>}, {transform_indices = @transform_2, window_bounds = array<i64: 1, 16, 8>}]} {
    %c0_i32 = arith.constant 0 : i32
    %0 = arith.cmpi eq, %arg2, %c0_i32 : i32
    %1 = arith.extui %0 : i1 to i32
    %c0_i32_0 = arith.constant 0 : i32
    %2 = arith.cmpi ne, %1, %c0_i32_0 : i32
    scf.if %2 {
      %c0_8 = arith.constant 0 : index
      %c0_9 = arith.constant 0 : index
      %c0_10 = arith.constant 0 : index
      %10 = vector.load %arg3[%c0_8, %c0_9, %c0_10] : memref<1x1x8xf32, #tpu.memory_space<vmem>>, vector<1x1x8xf32>
      %11 = vector.shape_cast %10 : vector<1x1x8xf32> to vector<1x8xf32>
      %cst_11 = arith.constant 1.000000e+00 : f32
      %12 = vector.broadcast %cst_11 : f32 to vector<1x8xf32>
      %13 = arith.addf %11, %12 : vector<1x8xf32>
      %cst_12 = arith.constant 5.000000e-01 : f32
      %14 = vector.broadcast %cst_12 : f32 to vector<1x8xf32>
      %15 = arith.mulf %13, %14 : vector<1x8xf32>
      %cst_13 = arith.constant 7.000000e+00 : f32
      %16 = vector.broadcast %cst_13 : f32 to vector<1x8xf32>
      %17 = arith.mulf %15, %16 : vector<1x8xf32>
      %18 = tpu.iota {dimensions = array<i32: 0>} : vector<8x8xi32>
      %19 = arith.sitofp %18 : vector<8x8xi32> to vector<8x8xf32>
      %20 = vector.broadcast %17 : vector<1x8xf32> to vector<8x8xf32>
      %21 = arith.subf %19, %20 : vector<8x8xf32>
      %22 = math.absf %21 : vector<8x8xf32>
      %cst_14 = arith.constant 1.000000e+00 : f32
      %23 = vector.broadcast %cst_14 : f32 to vector<8x8xf32>
      %24 = arith.subf %23, %22 : vector<8x8xf32>
      %cst_15 = arith.constant 0.000000e+00 : f32
      %25 = vector.broadcast %cst_15 : f32 to vector<8x8xf32>
      %26 = arith.maximumf %25, %24 : vector<8x8xf32>
      %c0_16 = arith.constant 0 : index
      %c0_17 = arith.constant 0 : index
      %27 = vector.load %arg6[%c0_16, %c0_17] : memref<8x8xf32, #tpu.memory_space<vmem>>, vector<8x8xf32>
      tpu.vector_store %arg6[%c0_16, %c0_17], %26 {strides = array<i32>} : memref<8x8xf32, #tpu.memory_space<vmem>>, vector<8x8xf32>,
    } else {
    }
    %c0 = arith.constant 0 : index
    %c0_1 = arith.constant 0 : index
    %c0_2 = arith.constant 0 : index
    %3 = vector.load %arg4[%c0, %c0_1, %c0_2] : memref<1x16x8xf32, #tpu.memory_space<vmem>>, vector<1x16x8xf32>
    %4 = vector.shape_cast %3 : vector<1x16x8xf32> to vector<16x8xf32>
    %c0_3 = arith.constant 0 : index
    %c0_4 = arith.constant 0 : index
    %5 = vector.load %arg6[%c0_3, %c0_4] : memref<8x8xf32, #tpu.memory_space<vmem>>, vector<8x8xf32>
    %cst = arith.constant dense<0.000000e+00> : vector<16x8xf32>
    %6 = tpu.matmul %4, %5, %cst {dimension_numbers = #tpu.dot_dimension_numbers<[1], [0], [0], [1], [0, 0, 1, 1], [], []>} : vector<16x8xf32>, vector<8x8xf32>, vector<16x8xf32> -> vector<16x8xf32>
    %c0_5 = arith.constant 0 : index
    %c0_6 = arith.constant 0 : index
    %c0_7 = arith.constant 0 : index
    %7 = vector.load %arg5[%c0_5, %c0_6, %c0_7] : memref<1x16x8xf32, #tpu.memory_space<vmem>>, vector<1x16x8xf32>
    %8 = vector.shape_cast %7 : vector<1x16x8xf32> to vector<16x8xf32>
    %9 = vector.shape_cast %6 : vector<16x8xf32> to vector<1x16x8xf32>
    tpu.vector_store %arg5[%c0_5, %c0_6, %c0_7], %9 {strides = array<i32>} : memref<1x16x8xf32, #tpu.memory_space<vmem>>, vector<1x16x8xf32>,
    return
  }
  func.func @transform_0(%arg0: i32, %arg1: i32, %arg2: i32) -> (i32, i32, i32) {
    %c0_i32 = arith.constant 0 : i32
    %c0_i32_0 = arith.constant 0 : i32
    return %arg0, %c0_i32, %arg1 : i32, i32, i32
  }
  func.func @transform_1(%arg0: i32, %arg1: i32, %arg2: i32) -> (i32, i32, i32) {
    %c0_i32 = arith.constant 0 : i32
    %c0_i32_0 = arith.constant 0 : i32
    %c0_i32_1 = arith.constant 0 : i32
    return %arg0, %c0_i32, %c0_i32_0 : i32, i32, i32
  }
  func.func @transform_2(%arg0: i32, %arg1: i32, %arg2: i32) -> (i32, i32, i32) {
    %c0_i32 = arith.constant 0 : i32
    %c0_i32_0 = arith.constant 0 : i32
    return %arg0, %c0_i32, %arg1 : i32, i32, i32
  }
}

</mosaic_0001>

<llo_original>
// kernel: time_warp.1
$region0: #{time_warp.1}
  #allocation0 [shape = 'u32[]', space=smem, size = 0x4, offset = 0x4, fixed_abs, tag = 'smem constant byte address 0x4 - core index']
  #allocation1 [shape = 'u32[144,128]{1,0:T(1,128)}', space=vmem, size = 0x12000, scoped, tag = 'internal scratch']
  #allocation2 [shape = 'f32[8,8]{1,0:T(8,128)}', space=vmem, size = 0x1000, scoped, tag = 'scratch operand']
  %s0 = inlined_call_operand.vmem [shape: f32[2,1,8], index: 0, kind: input, shape index: {}]
  %s1 = inlined_call_operand.vmem [shape: f32[2,16,8], index: 1, kind: input, shape index: {}]
  %s2 = inlined_call_operand.vmem [shape: f32[2,16,8], index: 2, kind: output, shape index: {}]
  %s3 = sld [smem:[#allocation0]]
  $region45: #{time_warp.1} parent=0
    _
  %s5 = ssub.s32 1, %s3
  %s6 = scalar_select 0, %s5, %s3
  loop: start=0, step=1, limit=4
  $region2: #{time_warp.1} parent=0 // loop_pre_header
    _
  $region3: #{time_warp.1} parent=0 // loop_header
    %s8 = sphi 0, %s12
    %p9 = scmp.ge.s32.totalorder %s8, 4
    %s15 = sphi 0, %s34
    %s16 = sphi 0, %s30
    %s17 = sphi 0, %s26
    %s18 = sphi 0, %s15
    %s19 = sphi 0, %s16
    %s20 = sphi 0, %s17
    %s21 = sphi 0, %s18
    %s22 = sphi 0, %s19
    %s23 = sphi 0, %s20
    %s39 = sphi 0, %s41
    %s42 = sphi 0, %s39
    %s43 = sphi 0, %s42
    %s59 = sphi 0, %s43
    %s65 = sphi 0, %s67
    %s68 = sphi 0, %s65
    %s69 = sphi 0, %s68
    %s85 = sphi 0, %s69
    %s93 = sphi 0, %s95
    %s96 = sphi 0, %s93
    %s97 = sphi 0, %s96
    %s113 = sphi 0, %s97
  $region4: #{time_warp.1} parent=0 // loop_header_branch
    %11 = sbr.rel (%p9) target = $region8
  $region5: #{time_warp.1} parent=0 // loop_body
    %s13 = ssub.s32 %s8, 1
    %s14 = ssub.s32 %s8, 2
    %s24 = sadd.s32 1, %s17
    %p25 = scmp.ge.s32.totalorder %s24, 1
    %s26 = scalar_select %p25, 0, %s24
    %s27 = sadd.s32 1, %s16
    %s28 = scalar_select %p25, %s27, %s16
    %p29 = scmp.ge.s32.totalorder %s28, 1
    %s30 = scalar_select %p29, 0, %s28
    %s31 = sadd.s32 1, %s15
    %s32 = scalar_select %p29, %s31, %s15
    %p33 = scmp.ge.s32.totalorder %s32, 2
    %s34 = scalar_select %p33, 0, %s32
    %s35 = ssub.s32 %s15, %s34
    %s36 = ssub.s32 %s16, %s30
    %s37 = sor.u32 %s35, %s36
    %p38 = scmp.eq.s32.totalorder %s37, 0
    %s40 = sadd.s32 %s39, 1
    %s41 = scalar_select %p38, %s39, %s40
    %p44 = pneg %p38
    %p45 = scmp.eq.s32.totalorder %s8, 1
    %p46 = por %p44, %p45
    %p47 = scmp.ne.s32.totalorder %s39, %s42
    %p48 = scmp.eq.s32.totalorder %s8, 0
    %p49 = por %p47, %p48
    %p50 = scmp.ne.s32.totalorder %s39, %s42
    %p51 = scmp.eq.s32.totalorder %s13, 1
    %p52 = por %p50, %p51
    %p53 = scmp.ne.s32.totalorder %s42, %s43
    %p54 = scmp.eq.s32.totalorder %s13, 0
    %p55 = por %p53, %p54
    %p56 = scmp.ne.s32.totalorder %s42, %s43
    %p57 = scmp.eq.s32.totalorder %s14, 1
    %p58 = por %p56, %p57
    %p60 = scmp.ne.s32.totalorder %s43, %s59
    %p61 = scmp.eq.s32.totalorder %s14, 0
    %p62 = por %p60, %p61
    %s63 = ssub.s32 %s15, %s34
    %p64 = scmp.eq.s32.totalorder %s63, 0
    %s66 = sadd.s32 %s65, 1
    %s67 = scalar_select %p64, %s65, %s66
    %p70 = pneg %p64
    %p71 = scmp.eq.s32.totalorder %s8, 1
    %p72 = por %p70, %p71
    %p73 = scmp.ne.s32.totalorder %s65, %s68
    %p74 = scmp.eq.s32.totalorder %s8, 0
    %p75 = por %p73, %p74
    %p76 = scmp.ne.s32.totalorder %s65, %s68
    %p77 = scmp.eq.s32.totalorder %s13, 1
    %p78 = por %p76, %p77
    %p79 = scmp.ne.s32.totalorder %s68, %s69
    %p80 = scmp.eq.s32.totalorder %s13, 0
    %p81 = por %p79, %p80
    %p82 = scmp.ne.s32.totalorder %s68, %s69
    %p83 = scmp.eq.s32.totalorder %s14, 1
    %p84 = por %p82, %p83
    %p86 = scmp.ne.s32.totalorder %s69, %s85
    %p87 = scmp.eq.s32.totalorder %s14, 0
    %p88 = por %p86, %p87
    %s89 = ssub.s32 %s15, %s34
    %s90 = ssub.s32 %s16, %s30
    %s91 = sor.u32 %s89, %s90
    %p92 = scmp.eq.s32.totalorder %s91, 0
    %s94 = sadd.s32 %s93, 1
    %s95 = scalar_select %p92, %s93, %s94
    %p98 = pneg %p92
    %p99 = scmp.eq.s32.totalorder %s8, 1
    %p100 = por %p98, %p99
    %p101 = scmp.ne.s32.totalorder %s93, %s96
    %p102 = scmp.eq.s32.totalorder %s8, 0
    %p103 = por %p101, %p102
    %p104 = scmp.ne.s32.totalorder %s93, %s96
    %p105 = scmp.eq.s32.totalorder %s13, 1
    %p106 = por %p104, %p105
    %p107 = scmp.ne.s32.totalorder %s96, %s97
    %p108 = scmp.eq.s32.totalorder %s13, 0
    %p109 = por %p107, %p108
    %p110 = scmp.ne.s32.totalorder %s96, %s97
    %p111 = scmp.eq.s32.totalorder %s14, 1
    %p112 = por %p110, %p111
    %p114 = scmp.ne.s32.totalorder %s97, %s113
    %p115 = scmp.eq.s32.totalorder %s14, 0
    %p116 = por %p114, %p115
    %p117 = scmp.le.s32.totalorder 1, %s8
    %p118 = scmp.lt.s32.totalorder %s8, 3
    %p119 = pnand %p117, %p118
    %p120 = pneg %p119
    // Predicated region
    $region9: #{time_warp.1} parent=5 // pred_check
      _
    $region10: #{time_warp.1} parent=5 // pred_check_branch
      %122 = sbr.rel (%p119) target = $region12
    $region11: #{time_warp.1} parent=5 // pred_region
      %s123 = ssub.s32 %s8, 1
    $region12: #{time_warp.1} parent=5 // pred_fallthru
      _
    %p124 = scmp.lt.s32.totalorder %s8, 2
    // Predicated region
    $region13: #{time_warp.1} parent=5 // pred_check
      %p125 = pneg %p124
    $region14: #{time_warp.1} parent=5 // pred_check_branch
      %127 = sbr.rel (%p125) target = $region16
    $region15: #{time_warp.1} parent=5 // pred_region
      // Predicated region
      $region17: #{time_warp.1} parent=15 // pred_check
        %p128 = pneg %p49
      $region18: #{time_warp.1} parent=15 // pred_check_branch
        %130 = sbr.rel (%p128) target = $region20
      $region19: #{time_warp.1} parent=15 // pred_region
        %p131 = scmp.lt.s32.totalorder %s15, 1
        %s132 = scalar_select %p131, %s15, 1
        %p133 = scmp.lt.s32.totalorder %s16, 0
        %s134 = scalar_select %p133, %s16, 0
        %s135 = sadd.s32 %s134, %s132
        %s136 = scalar_lea.vmem %s0, %s135
      $region20: #{time_warp.1} parent=15 // pred_fallthru
        _
      // Predicated region
      $region21: #{time_warp.1} parent=15 // pred_check
        %p137 = pneg %p75
      $region22: #{time_warp.1} parent=15 // pred_check_branch
        %139 = sbr.rel (%p137) target = $region24
      $region23: #{time_warp.1} parent=15 // pred_region
        %p140 = scmp.lt.s32.totalorder %s15, 1
        %s141 = scalar_select %p140, %s15, 1
        %s142 = smul.addr %s141, 2
        %s143 = smul.addr %s142, 8
        %s144 = scalar_lea.vmem %s1, %s143
      $region24: #{time_warp.1} parent=15 // pred_fallthru
        _
    $region16: #{time_warp.1} parent=5 // pred_fallthru
      _
    %p145 = scmp.le.s32.totalorder 1, %s8
    %p146 = scmp.lt.s32.totalorder %s8, 3
    %p147 = pnand %p145, %p146
    %p148 = pneg %p147
    // Predicated region
    $region25: #{time_warp.1} parent=5 // pred_check
      _
    $region26: #{time_warp.1} parent=5 // pred_check_branch
      %150 = sbr.rel (%p147) target = $region28
    $region27: #{time_warp.1} parent=5 // pred_region
      %s151 = ssub.s32 %s8, 1
      %p152 = scmp.lt.s32.totalorder %s18, 1
      %s153 = scalar_select %p152, %s18, 1
      %p154 = scmp.lt.s32.totalorder %s19, 0
      %s155 = scalar_select %p154, %s19, 0
      %s156 = sadd.s32 %s155, %s153
      %s157 = scalar_lea.vmem %s0, %s156
      %p158 = pneg %p55
      %p159 = pneg %p52
      %p160 = scmp.lt.s32.totalorder %s18, 1
      %s161 = scalar_select %p160, %s18, 1
      %s162 = smul.addr %s161, 2
      %s163 = smul.addr %s162, 8
      %s164 = scalar_lea.vmem %s1, %s163
      %p165 = pneg %p81
      %p166 = pneg %p78
      %p167 = pneg %p109
      %p168 = pneg %p106
      %p169 = scmp.lt.s32.totalorder %s18, 1
      %s170 = scalar_select %p169, %s18, 1
      %p171 = scmp.lt.s32.totalorder %s19, 0
      %s172 = scalar_select %p171, %s19, 0
      %s173 = smul.addr %s170, 2
      %s174 = sadd.s32 %s172, %s173
      %s175 = smul.addr %s174, 8
      %s176 = scalar_lea.vmem %s2, %s175
      %p177 = scmp.lt.s32.totalorder %s18, 1
      %s178 = scalar_select %p177, %s18, 1
      %p179 = scmp.lt.s32.totalorder %s19, 0
      %s180 = scalar_select %p179, %s19, 0
      %s181 = sadd.s32 %s180, %s178
      %s182 = scalar_lea.vmem %s0, %s181
      %p183 = scmp.lt.s32.totalorder %s18, 1
      %s184 = scalar_select %p183, %s18, 1
      %s185 = smul.addr %s184, 2
      %s186 = smul.addr %s185, 8
      %s187 = scalar_lea.vmem %s1, %s186
      %p188 = scmp.lt.s32.totalorder %s18, 1
      %s189 = scalar_select %p188, %s18, 1
      %p190 = scmp.lt.s32.totalorder %s19, 0
      %s191 = scalar_select %p190, %s19, 0
      %s192 = smul.addr %s189, 2
      %s193 = sadd.s32 %s191, %s192
      %s194 = smul.addr %s193, 8
      %s195 = scalar_lea.vmem %s2, %s194
      %p196 = scmp.eq.s32.totalorder %s20, 0
      // Predicated region
      $region29: #{time_warp.1} parent=27 // pred_check
        %p197 = pneg %p196
      $region30: #{time_warp.1} parent=27 // pred_check_branch
        %199 = sbr.rel (%p197) target = $region32
      $region31: #{time_warp.1} parent=27 // pred_region
        %v200 = vld [vmem:[%s182] sm:$0x1]
        %v201 = vadd.f32 %v200, 1.0
        %v202 = vmul.f32 %v201, 0.5
        %v203 = vmul.f32 %v202, 7.0
        %v204 = vlaneseq
        %v205 = vshrl.u32 %v204, 7
        %v206 = vcvt.s32.f32 %v205
        %v208 = vlaneseq
        %v209 = vshrl.u32 %v208, 7
        %v210 = vsub.s32 0, %v209
        %v211 = vrot.slane %v203, %v210
        %v213 = vsub.f32 %v206, %v211
        %v214 = vand.u32 2147483647, %v213
        %v215 = vsub.f32 1.0, %v214
        %v216 = vmax.f32 %v215, 0.0
        %vm217 = vcmask 64512
        %218 = vst.msk [vmem:[#allocation2] sm:$0xff] %vm217, %v216
      $region32: #{time_warp.1} parent=27 // pred_fallthru
        _
      %v219 = vld [vmem:[%s187] sm:$0xff]
      %v220 = vld [vmem:[%s187 + $0x8] sm:$0xff]
      %v221 = vld [vmem:[#allocation2] sm:$0xff]
      %vm222 = vcmask 64512
      %v224 = vsel %vm222, %v219, 0
      %v227 = vsel %vm222, %v220, 0
      %229 = vmatprep.subr.mxu0 0.0
      %230 = vmatpush1.msra.mxu0 %v221
      %231 = vmatprep.subr.mxu0 0.0
      %232 = vmatpush1.msra.mxu0 0.0
      %233 = vmatprep.subr.mxu0 0.0
      %234 = vmatpush1.msra.mxu0 0.0
      %235 = vmatprep.subr.mxu0 0.0
      %236 = vmatpush1.msra.mxu0 0.0
      %237 = vmatprep.subr.mxu0 0.0
      %238 = vmatpush1.msra.mxu0 0.0
      %239 = vmatprep.subr.mxu0 0.0
      %240 = vmatpush1.msra.mxu0 0.0
      %241 = vmatprep.subr.mxu0 0.0
      %242 = vmatpush1.msra.mxu0 0.0
      %243 = vmatprep.subr.mxu0 0.0
      %244 = vmatpush1.msra.mxu0 0.0
      %245 = vmatprep.subr.mxu0 0.0
      %246 = vmatpush1.msra.mxu0 0.0
      %247 = vmatprep.subr.mxu0 0.0
      %248 = vmatpush1.msra.mxu0 0.0
      %249 = vmatprep.subr.mxu0 0.0
      %250 = vmatpush1.msra.mxu0 0.0
      %251 = vmatprep.subr.mxu0 0.0
      %252 = vmatpush1.msra.mxu0 0.0
      %253 = vmatprep.subr.mxu0 0.0
      %254 = vmatpush1.msra.mxu0 0.0
      %255 = vmatprep.subr.mxu0 0.0
      %256 = vmatpush1.msra.mxu0 0.0
      %257 = vmatprep.subr.mxu0 0.0
      %258 = vmatpush1.msra.mxu0 0.0
      %259 = vmatprep.subr.mxu0 0.0
      %260 = vmatpush1.msra.mxu0 0.0
      %261 = vmatprep.subr.mxu0 0.0
      %262 = vmatpush1.msra.mxu0 0.0
      %263 = vmatprep.subr.mxu0 0.0
      %264 = vmatpush1.msra.mxu0 0.0
      %265 = vmatprep.subr.mxu0 0.0
      %266 = vmatpush1.msra.mxu0 0.0
      %267 = vmatprep.subr.mxu0 0.0
      %268 = vmatpush1.msra.mxu0 0.0
      %269 = vmatprep.subr.mxu0 0.0
      %270 = vmatpush1.msra.mxu0 0.0
      %271 = vmatprep.subr.mxu0 0.0
      %272 = vmatpush1.msra.mxu0 0.0
      %273 = vmatprep.subr.mxu0 0.0
      %274 = vmatpush1.msra.mxu0 0.0
      %275 = vmatprep.subr.mxu0 0.0
      %276 = vmatpush1.msra.mxu0 0.0
      %277 = vmatprep.subr.mxu0 0.0
      %278 = vmatpush1.msra.mxu0 0.0
      %279 = vmatprep.subr.mxu0 0.0
      %280 = vmatpush1.msra.mxu0 0.0
      %281 = vmatprep.subr.mxu0 0.0
      %282 = vmatpush1.msra.mxu0 0.0
      %283 = vmatprep.subr.mxu0 0.0
      %284 = vmatpush1.msra.mxu0 0.0
      %285 = vmatprep.subr.mxu0 0.0
      %286 = vmatpush1.msra.mxu0 0.0
      %287 = vmatprep.subr.mxu0 0.0
      %288 = vmatpush1.msra.mxu0 0.0
      %289 = vmatprep.subr.mxu0 0.0
      %290 = vmatpush1.msra.mxu0 0.0
      %291 = vmatprep.subr.mxu0 0.0
      %292 = vmatpush1.msra.mxu0 0.0
      %293 = vmatprep.mubr.f32.mxu0 0.0
      %294 = vmatmul.mubr.f32.gmra.mrb[0].mxu0 %v224
      %v295 = vpop.f32.mrb[0].mxu0
      %v296 = vadd.f32 0.0, %v295
      %v297 = vpop.f32.mrb[0].mxu0
      %298 = vmatprep.mubr.f32.mxu0 0.0
      %299 = vmatmul.mubr.f32.gmra.mrb[0].mxu0 %v227
      %v300 = vpop.f32.mrb[0].mxu0
      %v301 = vadd.f32 0.0, %v300
      %v302 = vpop.f32.mrb[0].mxu0
      %303 = vdwg.mxu0
      %304 = vst.msk [vmem:[%s195] sm:$0xff] %vm222, %v296
      %305 = vst.msk [vmem:[%s195 + $0x8] sm:$0xff] %vm222, %v301
      %p306 = scmp.lt.s32.totalorder %s18, 1
      %s307 = scalar_select %p306, %s18, 1
      %p308 = scmp.lt.s32.totalorder %s19, 0
      %s309 = scalar_select %p308, %s19, 0
      %s310 = smul.addr %s307, 2
      %s311 = sadd.s32 %s309, %s310
      %s312 = smul.addr %s311, 8
      %s313 = scalar_lea.vmem %s2, %s312
      // Predicated region
      $region33: #{time_warp.1} parent=27 // pred_check
        %p314 = pneg %p106
      $region34: #{time_warp.1} parent=27 // pred_check_branch
        %316 = sbr.rel (%p314) target = $region36
      $region35: #{time_warp.1} parent=27 // pred_region
        _
      $region36: #{time_warp.1} parent=27 // pred_fallthru
        _
    $region28: #{time_warp.1} parent=5 // pred_fallthru
      _
    %p317 = scmp.le.s32.totalorder 2, %s8
    // Predicated region
    $region37: #{time_warp.1} parent=5 // pred_check
      %p318 = pneg %p317
    $region38: #{time_warp.1} parent=5 // pred_check_branch
      %320 = sbr.rel (%p318) target = $region40
    $region39: #{time_warp.1} parent=5 // pred_region
      %s321 = ssub.s32 %s8, 2
      // Predicated region
      $region41: #{time_warp.1} parent=39 // pred_check
        %p322 = pneg %p112
      $region42: #{time_warp.1} parent=39 // pred_check_branch
        %324 = sbr.rel (%p322) target = $region44
      $region43: #{time_warp.1} parent=39 // pred_region
        %p325 = scmp.lt.s32.totalorder %s21, 1
        %s326 = scalar_select %p325, %s21, 1
        %p327 = scmp.lt.s32.totalorder %s22, 0
        %s328 = scalar_select %p327, %s22, 0
        %s329 = smul.addr %s326, 2
        %s330 = sadd.s32 %s328, %s329
        %s331 = smul.addr %s330, 8
        %s332 = scalar_lea.vmem %s2, %s331
      $region44: #{time_warp.1} parent=39 // pred_fallthru
        _
    $region40: #{time_warp.1} parent=5 // pred_fallthru
      _
  $region6: #{time_warp.1} parent=0 // loop_footer
    %s12 = sadd.s32 1, %s8
  $region7: #{time_warp.1} parent=0 // loop_footer_branch
    %7 = sbr.rel target = $region3
  $region8: #{time_warp.1} parent=0 // loop_exit
    _

</llo_original>
